<compile_context>
chip_gen: v5e
topology: v5e:2x2
jax: 0.10.0
libtpu: 0.0.40
codegen_flags: <defaults>
</compile_context>

<pallas_src>
import functools

import jax
import jax.numpy as jnp
from jax import lax
from jax.experimental import pallas as pl
from jax.experimental.pallas import tpu as pltpu

LANE = 128


def _round_up(n, m):
    return ((n + m - 1) // m) * m


def _pad2d(a, rows, cols):
    return jnp.pad(a, ((0, rows - a.shape[0]), (0, cols - a.shape[1])))


def _vmem_limit_bytes():
    # Generation-aware VMEM budget: leave headroom for compiler scratch
    # (v7x only has 64 MiB per TensorCore).
    try:
        cap = int(pltpu.get_tpu_info().vmem_capacity_bytes)
    except Exception:
        cap = 64 << 20
    return min((cap * 3) // 4, 96 << 20)


# ---------------------------------------------------------------------------
# Encoder: z = noise * exp(logstd) + mean, with fused mean/logstd weights.
# ---------------------------------------------------------------------------
def _encoder_kernel(x_ref, adj_ref, w1_ref, wms_ref, noise_ref, z_ref, *, h2p):
    adj = adj_ref[...].astype(jnp.bfloat16)

    # gc1: relu(adj @ (x @ W1)) — bf16 MXU operands, f32 accumulation.
    xw = jnp.dot(x_ref[...].astype(jnp.bfloat16), w1_ref[...].astype(jnp.bfloat16),
                 preferred_element_type=jnp.float32)
    hidden = jnp.maximum(
        jnp.dot(adj, xw.astype(jnp.bfloat16), preferred_element_type=jnp.float32),
        0.0)

    # dropout(p=0.0) is the identity.
    # TODO(synk): non-zero dropout would need pltpu.prng_random_bits masking.

    # Fused gcn_mean / gcn_logstddev: one matmul through W_ms = [Wm | Ws].
    hms = jnp.dot(hidden.astype(jnp.bfloat16), wms_ref[...].astype(jnp.bfloat16),
                  preferred_element_type=jnp.float32)
    ms = jnp.dot(adj, hms.astype(jnp.bfloat16), preferred_element_type=jnp.float32)
    mean = ms[:, :h2p]
    logstd = ms[:, h2p:]

    # Reparameterization (elementwise in f32). Padded cols/rows stay exactly 0
    # because noise and W_ms are zero-padded.
    z_ref[...] = noise_ref[...] * jnp.exp(logstd) + mean


# ---------------------------------------------------------------------------
# Decoder: A_pred block = sigmoid(z_i @ z_j^T); X_pred row block folded in.
# ---------------------------------------------------------------------------
def _decoder_kernel(zi_ref, zj_ref, fw_ref, a_ref, xp_ref):
    zi = zi_ref[...].astype(jnp.bfloat16)

    # z_i @ z_j^T as trans_b on the MXU (no XLU transpose / z copy).
    logits = lax.dot_general(
        zi, zj_ref[...].astype(jnp.bfloat16),
        dimension_numbers=(((1,), (1,)), ((), ())),
        preferred_element_type=jnp.float32)

    # sigmoid(x) = 0.5 * tanh(0.5 x) + 0.5 : one EUP op + VPU fma per element.
    a_ref[...] = 0.5 * jnp.tanh(0.5 * logits) + 0.5

    # Feature decoder, once per row block (j axis is "arbitrary"; the X_pred
    # block stays resident across j and is written back when i changes).
    @pl.when(pl.program_id(1) == 0)
    def _():
        xp = jnp.dot(zi, fw_ref[...].astype(jnp.bfloat16),
                     preferred_element_type=jnp.float32)
        xp_ref[...] = jnp.where(xp >= 0.0, xp, 0.01 * xp)  # leaky_relu, slope 0.01


# ---------------------------------------------------------------------------
# Wrapper
# ---------------------------------------------------------------------------
def age_forward(x, adj, w1, wm, ws, noise, fea_weight):
    N, D = x.shape
    H1 = w1.shape[1]
    H2 = wm.shape[1]

    Np = _round_up(N, LANE)
    Dp = _round_up(D, LANE)
    H1p = _round_up(H1, LANE)
    H2p = _round_up(H2, LANE)

    f32 = jnp.float32
    x_p = _pad2d(x.astype(f32), Np, Dp)
    adj_p = _pad2d(adj.astype(f32), Np, Np)
    w1_p = _pad2d(w1.astype(f32), Dp, H1p)
    wms_p = jnp.concatenate([_pad2d(wm.astype(f32), H1p, H2p),
                             _pad2d(ws.astype(f32), H1p, H2p)], axis=1)
    noise_p = _pad2d(noise.astype(f32), Np, H2p)
    fw_p = _pad2d(fea_weight.astype(f32), H2p, Dp)

    vmem_limit = _vmem_limit_bytes()
    full = lambda a: pl.BlockSpec(a.shape, lambda: (0,) * a.ndim,
                                  memory_space=pltpu.VMEM)

    # --- Encoder: single shot, adj fully resident (fine at demo scale). ---
    # TODO(synk): at large N the two adj matmuls need K-blocked accumulation
    # (grid over node blocks + f32 VMEM accumulator) since adj won't fit VMEM.
    z = pl.pallas_call(
        functools.partial(_encoder_kernel, h2p=H2p),
        out_shape=jax.ShapeDtypeStruct((Np, H2p), jnp.float32),
        grid=(),
        in_specs=[full(x_p), full(adj_p), full(w1_p), full(wms_p), full(noise_p)],
        out_specs=pl.BlockSpec((Np, H2p), lambda: (0, 0), memory_space=pltpu.VMEM),
        compiler_params=pltpu.CompilerParams(vmem_limit_bytes=vmem_limit),
    )(x_p, adj_p, w1_p, wms_p, noise_p)

    # --- Decoder: tiled over A_pred (row_block, col_block); streams to HBM. ---
    if Np % 512 == 0:
        tile = 512
    elif Np % 256 == 0:
        tile = 256
    else:
        tile = 128
    grid = (Np // tile, Np // tile)

    a_pred_p, x_pred_p = pl.pallas_call(
        _decoder_kernel,
        out_shape=(jax.ShapeDtypeStruct((Np, Np), jnp.float32),   # A_pred
                   jax.ShapeDtypeStruct((Np, Dp), jnp.float32)),  # X_pred
        grid=grid,
        in_specs=[pl.BlockSpec((tile, H2p), lambda i, j: (i, 0)),  # z row block
                  pl.BlockSpec((tile, H2p), lambda i, j: (j, 0)),  # z col block
                  pl.BlockSpec((H2p, Dp), lambda i, j: (0, 0))],   # fea_weight
        out_specs=(pl.BlockSpec((tile, tile), lambda i, j: (i, j)),
                   pl.BlockSpec((tile, Dp), lambda i, j: (i, 0))),
        compiler_params=pltpu.CompilerParams(
            dimension_semantics=("parallel", "arbitrary"),
            vmem_limit_bytes=vmem_limit),
    )(z, z, fw_p)

    return a_pred_p[:N, :N], x_pred_p[:N, :D]


def _glorot(key, fan_in, fan_out):
    limit = jnp.sqrt(6.0 / (fan_in + fan_out))
    return jax.random.uniform(key, (fan_in, fan_out), jnp.float32, -limit, limit)


def _reference(x, adj, w1, wm, ws, noise, fw):
    hidden = jax.nn.relu(adj @ (x @ w1))
    mean = adj @ (hidden @ wm)
    logstd = adj @ (hidden @ ws)
    z = noise * jnp.exp(logstd) + mean
    a_pred = jax.nn.sigmoid(z @ z.T)
    xp = z @ fw
    x_pred = jnp.where(xp >= 0.0, xp, 0.01 * xp)
    return a_pred, x_pred


if __name__ == "__main__":
    # small synthetic problem: N nodes, input_dim=16, hidden1=32, hidden2=16
    N, INPUT_DIM, H1, H2 = 32, 16, 32, 16

    key = jax.random.PRNGKey(0)
    k_x, k_adj, k_w1, k_wm, k_ws, k_noise, k_fw = jax.random.split(key, 7)

    x = jax.random.normal(k_x, (N, INPUT_DIM), jnp.float32)

    # symmetric, self-looped, row-normalized adjacency (typical GCN preprocessing)
    a = (jax.random.uniform(k_adj, (N, N)) > 0.8).astype(jnp.float32)
    a = jnp.maximum(a, a.T) + jnp.eye(N, dtype=jnp.float32)
    adj = a / jnp.sum(a, axis=1, keepdims=True)

    w1 = _glorot(k_w1, INPUT_DIM, H1)
    wm = _glorot(k_wm, H1, H2)
    ws = _glorot(k_ws, H1, H2)
    fea_weight = jax.random.normal(k_fw, (H2, INPUT_DIM), jnp.float32)

    # reparameterization noise (torch.randn equivalent), passed in for determinism
    noise = jax.random.normal(k_noise, (N, H2), jnp.float32)

    a_pred, x_pred = age_forward(x, adj, w1, wm, ws, noise, fea_weight)
    jax.block_until_ready((a_pred, x_pred))

    # sanity: shapes / dtypes / numerics (loose tol: bf16 MXU operands)
    assert a_pred.shape == (N, N) and x_pred.shape == (N, INPUT_DIM)
    assert a_pred.dtype == jnp.float32 and x_pred.dtype == jnp.float32
    a_ref, x_ref = _reference(x, adj, w1, wm, ws, noise, fea_weight)
    assert bool(jnp.allclose(a_pred, a_ref, atol=5e-2, rtol=5e-2))
    assert bool(jnp.allclose(x_pred, x_ref, atol=5e-2, rtol=5e-2))

    print("KERNEL_OK")
</pallas_src>

<mosaic_0001>
module attributes {stable_mosaic.version = 11 : i64} {
  func.func @_encoder_kernel(%arg0: memref<128x128xf32, #tpu.memory_space<vmem>>, %arg1: memref<128x128xf32, #tpu.memory_space<vmem>>, %arg2: memref<128x128xf32, #tpu.memory_space<vmem>>, %arg3: memref<128x256xf32, #tpu.memory_space<vmem>>, %arg4: memref<128x128xf32, #tpu.memory_space<vmem>>, %arg5: memref<128x128xf32, #tpu.memory_space<vmem>>) attributes {dimension_semantics = [], scalar_prefetch = 0 : i64, scratch_operands = 0 : i64, tpu.core_type = #tpu.core_type<tc>} {
    %c0 = arith.constant 0 : index
    %c0_0 = arith.constant 0 : index
    %0 = vector.load %arg1[%c0, %c0_0] : memref<128x128xf32, #tpu.memory_space<vmem>>, vector<128x128xf32>
    %1 = arith.truncf %0 : vector<128x128xf32> to vector<128x128xbf16>
    %c0_1 = arith.constant 0 : index
    %c0_2 = arith.constant 0 : index
    %2 = vector.load %arg0[%c0_1, %c0_2] : memref<128x128xf32, #tpu.memory_space<vmem>>, vector<128x128xf32>
    %3 = arith.truncf %2 : vector<128x128xf32> to vector<128x128xbf16>
    %c0_3 = arith.constant 0 : index
    %c0_4 = arith.constant 0 : index
    %4 = vector.load %arg2[%c0_3, %c0_4] : memref<128x128xf32, #tpu.memory_space<vmem>>, vector<128x128xf32>
    %5 = arith.truncf %4 : vector<128x128xf32> to vector<128x128xbf16>
    %cst = arith.constant dense<0.000000e+00> : vector<128x128xf32>
    %6 = tpu.matmul %3, %5, %cst {dimension_numbers = #tpu.dot_dimension_numbers<[1], [0], [0], [1], [0, 0, 1, 1], [], []>} : vector<128x128xbf16>, vector<128x128xbf16>, vector<128x128xf32> -> vector<128x128xf32>
    %7 = arith.truncf %6 : vector<128x128xf32> to vector<128x128xbf16>
    %cst_5 = arith.constant dense<0.000000e+00> : vector<128x128xf32>
    %8 = tpu.matmul %1, %7, %cst_5 {dimension_numbers = #tpu.dot_dimension_numbers<[1], [0], [0], [1], [0, 0, 1, 1], [], []>} : vector<128x128xbf16>, vector<128x128xbf16>, vector<128x128xf32> -> vector<128x128xf32>
    %cst_6 = arith.constant 0.000000e+00 : f32
    %9 = vector.broadcast %cst_6 : f32 to vector<128x128xf32>
    %10 = arith.maximumf %8, %9 : vector<128x128xf32>
    %11 = arith.truncf %10 : vector<128x128xf32> to vector<128x128xbf16>
    %c0_7 = arith.constant 0 : index
    %c0_8 = arith.constant 0 : index
    %12 = vector.load %arg3[%c0_7, %c0_8] : memref<128x256xf32, #tpu.memory_space<vmem>>, vector<128x256xf32>
    %13 = arith.truncf %12 : vector<128x256xf32> to vector<128x256xbf16>
    %cst_9 = arith.constant dense<0.000000e+00> : vector<128x256xf32>
    %14 = tpu.matmul %11, %13, %cst_9 {dimension_numbers = #tpu.dot_dimension_numbers<[1], [0], [0], [1], [0, 0, 1, 1], [], []>} : vector<128x128xbf16>, vector<128x256xbf16>, vector<128x256xf32> -> vector<128x256xf32>
    %15 = arith.truncf %14 : vector<128x256xf32> to vector<128x256xbf16>
    %cst_10 = arith.constant dense<0.000000e+00> : vector<128x256xf32>
    %16 = tpu.matmul %1, %15, %cst_10 {dimension_numbers = #tpu.dot_dimension_numbers<[1], [0], [0], [1], [0, 0, 1, 1], [], []>} : vector<128x128xbf16>, vector<128x256xbf16>, vector<128x256xf32> -> vector<128x256xf32>
    %17 = vector.extract_strided_slice %16 {offsets = [0, 0], sizes = [128, 128], strides = [1, 1]} : vector<128x256xf32> to vector<128x128xf32>
    %18 = vector.extract_strided_slice %16 {offsets = [0, 128], sizes = [128, 128], strides = [1, 1]} : vector<128x256xf32> to vector<128x128xf32>
    %c0_11 = arith.constant 0 : index
    %c0_12 = arith.constant 0 : index
    %19 = vector.load %arg4[%c0_11, %c0_12] : memref<128x128xf32, #tpu.memory_space<vmem>>, vector<128x128xf32>
    %20 = math.exp %18 : vector<128x128xf32>
    %21 = arith.mulf %19, %20 : vector<128x128xf32>
    %22 = arith.addf %21, %17 : vector<128x128xf32>
    %c0_13 = arith.constant 0 : index
    %c0_14 = arith.constant 0 : index
    %23 = vector.load %arg5[%c0_13, %c0_14] : memref<128x128xf32, #tpu.memory_space<vmem>>, vector<128x128xf32>
    tpu.vector_store %arg5[%c0_13, %c0_14], %22 {strides = array<i32>} : memref<128x128xf32, #tpu.memory_space<vmem>>, vector<128x128xf32>,
    return
  }
}

</mosaic_0001>

<llo_original>
// kernel: tpu_custom_call.1
$region0: #{tpu_custom_call.1}
  #allocation0 [shape = 'u32[]', space=smem, size = 0x4, offset = 0x4, fixed_abs, tag = 'smem constant byte address 0x4 - core index']
  #allocation1 [shape = 'u32[72,128]{1,0:T(1,128)}', space=vmem, size = 0x9000, scoped, tag = 'internal scratch']
  %s0 = inlined_call_operand.hbm [shape: f32[128,128], index: 0, kind: input, shape index: {}]
  %s1 = inlined_call_operand.hbm [shape: f32[128,128], index: 1, kind: input, shape index: {}]
  %s2 = inlined_call_operand.hbm [shape: f32[128,128], index: 2, kind: input, shape index: {}]
  %s3 = inlined_call_operand.hbm [shape: f32[128,256], index: 3, kind: input, shape index: {}]
  %s4 = inlined_call_operand.hbm [shape: f32[128,128], index: 4, kind: input, shape index: {}]
  %s5 = inlined_call_operand.hbm [shape: f32[128,128], index: 5, kind: output, shape index: {}]
  %s6 = sld [smem:[#allocation0]]
  $region50: #{tpu_custom_call.1} parent=0
    _
  %s8 = ssub.s32 1, %s6
  %s9 = scalar_select 0, %s8, %s6
  $region1: #{tpu_custom_call.1} parent=0
    #allocation2 [shape = 'u8[65536]{0}', space=vmem, size = 0x10000, scoped, tag = 'input window, operand 0, single buffered']
    #allocation3 [shape = 's32[1]{0}', space=sflag, size = 0x4, scoped, tag = 'scoped memory for tpu_custom_call.1']
    #allocation4 [shape = 's32[1]{0}', space=sflag, size = 0x4, scoped, tag = 'scoped memory for tpu_custom_call.1']
    #allocation5 [shape = 'u8[65536]{0}', space=vmem, size = 0x10000, scoped, tag = 'input window, operand 1, single buffered']
    #allocation6 [shape = 's32[1]{0}', space=sflag, size = 0x4, scoped, tag = 'scoped memory for tpu_custom_call.1']
    #allocation7 [shape = 'u8[65536]{0}', space=vmem, size = 0x10000, scoped, tag = 'input window, operand 2, single buffered']
    #allocation8 [shape = 'u8[131072]{0}', space=vmem, size = 0x20000, scoped, tag = 'input window, operand 3, single buffered']
    #allocation9 [shape = 's32[1]{0}', space=sflag, size = 0x4, scoped, tag = 'scoped memory for tpu_custom_call.1']
    #allocation10 [shape = 'u8[65536]{0}', space=vmem, size = 0x10000, scoped, tag = 'input window, operand 4, single buffered']
    #allocation11 [shape = 'u8[65536]{0}', space=vmem, size = 0x10000, scoped, tag = 'output window, operand 0, single buffered']
    %10 = vsyncpa [#allocation3], 0
    %11 = vsyncpa [#allocation6], 0
    %12 = vsyncpa [#allocation9], 0
    %13 = vsyncpa [#allocation4], 0
    // Predicated region
    $region2: #{tpu_custom_call.1} parent=1 // pred_check
      _
    $region3: #{tpu_custom_call.1} parent=1 // pred_check_branch
      %15 = sbr.rel (0) target = $region5
    $region4: #{tpu_custom_call.1} parent=1 // pred_region
      %17 = vsyncadd [#allocation3], 0
      %s18 = sshll.u32 %s0, 4
      %s19 = int_to_ptr.hbm [resolvable:$true] %s18
      %s20 = sshll.u32 [#allocation2], 4
      %s21 = int_to_ptr.vmem [resolvable:$true] %s20
      %26 = dma.hbm_to_vmem [thread:$0]  %s19, 2048, %s21, [#allocation3], 128, 128, 8
    $region5: #{tpu_custom_call.1} parent=1 // pred_fallthru
      _
    // Predicated region
    $region6: #{tpu_custom_call.1} parent=1 // pred_check
      _
    $region7: #{tpu_custom_call.1} parent=1 // pred_check_branch
      %28 = sbr.rel (0) target = $region9
    $region8: #{tpu_custom_call.1} parent=1 // pred_region
      %30 = vsyncadd [#allocation6], 0
      %s31 = sshll.u32 %s1, 4
      %s32 = int_to_ptr.hbm [resolvable:$true] %s31
      %s33 = sshll.u32 [#allocation5], 4
      %s34 = int_to_ptr.vmem [resolvable:$true] %s33
      %39 = dma.hbm_to_vmem [thread:$0]  %s32, 2048, %s34, [#allocation6], 128, 128, 8
    $region9: #{tpu_custom_call.1} parent=1 // pred_fallthru
      _
    // Predicated region
    $region10: #{tpu_custom_call.1} parent=1 // pred_check
      _
    $region11: #{tpu_custom_call.1} parent=1 // pred_check_branch
      %41 = sbr.rel (0) target = $region13
    $region12: #{tpu_custom_call.1} parent=1 // pred_region
      %43 = vsyncadd [#allocation6], 0
      %s44 = sshll.u32 %s2, 4
      %s45 = int_to_ptr.hbm [resolvable:$true] %s44
      %s46 = sshll.u32 [#allocation7], 4
      %s47 = int_to_ptr.vmem [resolvable:$true] %s46
      %52 = dma.hbm_to_vmem [thread:$0]  %s45, 2048, %s47, [#allocation6], 128, 128, 8
    $region13: #{tpu_custom_call.1} parent=1 // pred_fallthru
      _
    // Predicated region
    $region14: #{tpu_custom_call.1} parent=1 // pred_check
      _
    $region15: #{tpu_custom_call.1} parent=1 // pred_check_branch
      %54 = sbr.rel (0) target = $region17
    $region16: #{tpu_custom_call.1} parent=1 // pred_region
      %56 = vsyncadd [#allocation9], 0
      %s57 = sshll.u32 %s3, 4
      %s58 = int_to_ptr.hbm [resolvable:$true] %s57
      %s59 = sshll.u32 [#allocation8], 4
      %s60 = int_to_ptr.vmem [resolvable:$true] %s59
      %65 = dma.hbm_to_vmem [thread:$0]  %s58, 4096, %s60, [#allocation9], 256, 256, 16
    $region17: #{tpu_custom_call.1} parent=1 // pred_fallthru
      _
    // Predicated region
    $region18: #{tpu_custom_call.1} parent=1 // pred_check
      _
    $region19: #{tpu_custom_call.1} parent=1 // pred_check_branch
      %67 = sbr.rel (0) target = $region21
    $region20: #{tpu_custom_call.1} parent=1 // pred_region
      %69 = vsyncadd [#allocation9], 0
      %s70 = sshll.u32 %s4, 4
      %s71 = int_to_ptr.hbm [resolvable:$true] %s70
      %s72 = sshll.u32 [#allocation10], 4
      %s73 = int_to_ptr.vmem [resolvable:$true] %s72
      %78 = dma.hbm_to_vmem [thread:$0]  %s71, 2048, %s73, [#allocation9], 128, 128, 8
    $region21: #{tpu_custom_call.1} parent=1 // pred_fallthru
      _
    // Predicated region
    $region22: #{tpu_custom_call.1} parent=1 // pred_check
      _
    $region23: #{tpu_custom_call.1} parent=1 // pred_check_branch
      %80 = sbr.rel (0) target = $region25
    $region24: #{tpu_custom_call.1} parent=1 // pred_region
      %82 = dma.done [#allocation3], 2048
    $region25: #{tpu_custom_call.1} parent=1 // pred_fallthru
      _
    // Predicated region
    $region26: #{tpu_custom_call.1} parent=1 // pred_check
      _
    $region27: #{tpu_custom_call.1} parent=1 // pred_check_branch
      %84 = sbr.rel (0) target = $region29
    $region28: #{tpu_custom_call.1} parent=1 // pred_region
      %86 = dma.done [#allocation6], 2048
    $region29: #{tpu_custom_call.1} parent=1 // pred_fallthru
      _
    // Predicated region
    $region30: #{tpu_custom_call.1} parent=1 // pred_check
      _
    $region31: #{tpu_custom_call.1} parent=1 // pred_check_branch
      %88 = sbr.rel (0) target = $region33
    $region32: #{tpu_custom_call.1} parent=1 // pred_region
      %90 = dma.done [#allocation6], 2048
    $region33: #{tpu_custom_call.1} parent=1 // pred_fallthru
      _
    // Predicated region
    $region34: #{tpu_custom_call.1} parent=1 // pred_check
      _
    $region35: #{tpu_custom_call.1} parent=1 // pred_check_branch
      %92 = sbr.rel (0) target = $region37
    $region36: #{tpu_custom_call.1} parent=1 // pred_region
      %94 = dma.done [#allocation9], 4096
    $region37: #{tpu_custom_call.1} parent=1 // pred_fallthru
      _
    // Predicated region
    $region38: #{tpu_custom_call.1} parent=1 // pred_check
      _
    $region39: #{tpu_custom_call.1} parent=1 // pred_check_branch
      %96 = sbr.rel (0) target = $region41
    $region40: #{tpu_custom_call.1} parent=1 // pred_region
      %98 = dma.done [#allocation9], 2048
    $region41: #{tpu_custom_call.1} parent=1 // pred_fallthru
      _
    %v99 = vld [vmem:[#allocation5] sm:$0xff]
    %v100 = vld [vmem:[#allocation5 + $0x8] sm:$0xff]
    %v101 = vld [vmem:[#allocation5 + $0x10] sm:$0xff]
    %v102 = vld [vmem:[#allocation5 + $0x18] sm:$0xff]
    %v103 = vld [vmem:[#allocation5 + $0x20] sm:$0xff]
    %v104 = vld [vmem:[#allocation5 + $0x28] sm:$0xff]
    %v105 = vld [vmem:[#allocation5 + $0x30] sm:$0xff]
    %v106 = vld [vmem:[#allocation5 + $0x38] sm:$0xff]
    %v107 = vld [vmem:[#allocation5 + $0x40] sm:$0xff]
    %v108 = vld [vmem:[#allocation5 + $0x48] sm:$0xff]
    %v109 = vld [vmem:[#allocation5 + $0x50] sm:$0xff]
    %v110 = vld [vmem:[#allocation5 + $0x58] sm:$0xff]
    %v111 = vld [vmem:[#allocation5 + $0x60] sm:$0xff]
    %v112 = vld [vmem:[#allocation5 + $0x68] sm:$0xff]
    %v113 = vld [vmem:[#allocation5 + $0x70] sm:$0xff]
    %v114 = vld [vmem:[#allocation5 + $0x78] sm:$0xff]
    %v115 = vpack.c.bf16 %v100, %v99
    %v116 = vpack.c.bf16 %v102, %v101
    %v117 = vpack.c.bf16 %v104, %v103
    %v118 = vpack.c.bf16 %v106, %v105
    %v119 = vpack.c.bf16 %v108, %v107
    %v120 = vpack.c.bf16 %v110, %v109
    %v121 = vpack.c.bf16 %v112, %v111
    %v122 = vpack.c.bf16 %v114, %v113
    %v123 = vld [vmem:[#allocation2] sm:$0xff]
    %v124 = vld [vmem:[#allocation2 + $0x8] sm:$0xff]
    %v125 = vld [vmem:[#allocation2 + $0x10] sm:$0xff]
    %v126 = vld [vmem:[#allocation2 + $0x18] sm:$0xff]
    %v127 = vld [vmem:[#allocation2 + $0x20] sm:$0xff]
    %v128 = vld [vmem:[#allocation2 + $0x28] sm:$0xff]
    %v129 = vld [vmem:[#allocation2 + $0x30] sm:$0xff]
    %v130 = vld [vmem:[#allocation2 + $0x38] sm:$0xff]
    %v131 = vld [vmem:[#allocation2 + $0x40] sm:$0xff]
    %v132 = vld [vmem:[#allocation2 + $0x48] sm:$0xff]
    %v133 = vld [vmem:[#allocation2 + $0x50] sm:$0xff]
    %v134 = vld [vmem:[#allocation2 + $0x58] sm:$0xff]
    %v135 = vld [vmem:[#allocation2 + $0x60] sm:$0xff]
    %v136 = vld [vmem:[#allocation2 + $0x68] sm:$0xff]
    %v137 = vld [vmem:[#allocation2 + $0x70] sm:$0xff]
    %v138 = vld [vmem:[#allocation2 + $0x78] sm:$0xff]
    %v139 = vpack.c.bf16 %v124, %v123
    %v140 = vpack.c.bf16 %v126, %v125
    %v141 = vpack.c.bf16 %v128, %v127
    %v142 = vpack.c.bf16 %v130, %v129
    %v143 = vpack.c.bf16 %v132, %v131
    %v144 = vpack.c.bf16 %v134, %v133
    %v145 = vpack.c.bf16 %v136, %v135
    %v146 = vpack.c.bf16 %v138, %v137
    %v147 = vld [vmem:[#allocation7] sm:$0xff]
    %v148 = vld [vmem:[#allocation7 + $0x8] sm:$0xff]
    %v149 = vld [vmem:[#allocation7 + $0x10] sm:$0xff]
    %v150 = vld [vmem:[#allocation7 + $0x18] sm:$0xff]
    %v151 = vld [vmem:[#allocation7 + $0x20] sm:$0xff]
    %v152 = vld [vmem:[#allocation7 + $0x28] sm:$0xff]
    %v153 = vld [vmem:[#allocation7 + $0x30] sm:$0xff]
    %v154 = vld [vmem:[#allocation7 + $0x38] sm:$0xff]
    %v155 = vld [vmem:[#allocation7 + $0x40] sm:$0xff]
    %v156 = vld [vmem:[#allocation7 + $0x48] sm:$0xff]
    %v157 = vld [vmem:[#allocation7 + $0x50] sm:$0xff]
    %v158 = vld [vmem:[#allocation7 + $0x58] sm:$0xff]
    %v159 = vld [vmem:[#allocation7 + $0x60] sm:$0xff]
    %v160 = vld [vmem:[#allocation7 + $0x68] sm:$0xff]
    %v161 = vld [vmem:[#allocation7 + $0x70] sm:$0xff]
    %v162 = vld [vmem:[#allocation7 + $0x78] sm:$0xff]
    %v163 = vpack.c.bf16 %v148, %v147
    %v164 = vpack.c.bf16 %v150, %v149
    %v165 = vpack.c.bf16 %v152, %v151
    %v166 = vpack.c.bf16 %v154, %v153
    %v167 = vpack.c.bf16 %v156, %v155
    %v168 = vpack.c.bf16 %v158, %v157
    %v169 = vpack.c.bf16 %v160, %v159
    %v170 = vpack.c.bf16 %v162, %v161
    %171 = vmatpush.bf16.msra.mxu0 %v170
    %172 = vmatpush.bf16.msra.mxu0 %v169
    %173 = vmatpush.bf16.msra.mxu0 %v168
    %174 = vmatpush.bf16.msra.mxu0 %v167
    %175 = vmatpush.bf16.msra.mxu0 %v166
    %176 = vmatpush.bf16.msra.mxu0 %v165
    %177 = vmatpush.bf16.msra.mxu0 %v164
    %178 = vmatpush.bf16.msra.mxu0 %v163
    %179 = vmatmul.bf16.gmra.mxu0 %v139
    %v180 = vpop.f32.mrf.mxu0
    %v181 = vadd.f32 0.0, %v180
    %v182 = vpop.f32.mrf.mxu0
    %v183 = vadd.f32 0.0, %v182
    %184 = vmatmul.bf16.gmra.mxu0 %v140
    %v185 = vpop.f32.mrf.mxu0
    %v186 = vadd.f32 0.0, %v185
    %v187 = vpop.f32.mrf.mxu0
    %v188 = vadd.f32 0.0, %v187
    %189 = vmatmul.bf16.gmra.mxu0 %v141
    %v190 = vpop.f32.mrf.mxu0
    %v191 = vadd.f32 0.0, %v190
    %v192 = vpop.f32.mrf.mxu0
    %v193 = vadd.f32 0.0, %v192
    %194 = vmatmul.bf16.gmra.mxu0 %v142
    %v195 = vpop.f32.mrf.mxu0
    %v196 = vadd.f32 0.0, %v195
    %v197 = vpop.f32.mrf.mxu0
    %v198 = vadd.f32 0.0, %v197
    %199 = vmatmul.bf16.gmra.mxu0 %v143
    %v200 = vpop.f32.mrf.mxu0
    %v201 = vadd.f32 0.0, %v200
    %v202 = vpop.f32.mrf.mxu0
    %v203 = vadd.f32 0.0, %v202
    %204 = vmatmul.bf16.gmra.mxu0 %v144
    %v205 = vpop.f32.mrf.mxu0
    %v206 = vadd.f32 0.0, %v205
    %v207 = vpop.f32.mrf.mxu0
    %v208 = vadd.f32 0.0, %v207
    %209 = vmatmul.bf16.gmra.mxu0 %v145
    %v210 = vpop.f32.mrf.mxu0
    %v211 = vadd.f32 0.0, %v210
    %v212 = vpop.f32.mrf.mxu0
    %v213 = vadd.f32 0.0, %v212
    %214 = vmatmul.bf16.gmra.mxu0 %v146
    %v215 = vpop.f32.mrf.mxu0
    %v216 = vadd.f32 0.0, %v215
    %v217 = vpop.f32.mrf.mxu0
    %v218 = vadd.f32 0.0, %v217
    %219 = vdwg.mxu0
    %v220 = vpack.c.bf16 %v183, %v181
    %v221 = vpack.c.bf16 %v188, %v186
    %v222 = vpack.c.bf16 %v193, %v191
    %v223 = vpack.c.bf16 %v198, %v196
    %v224 = vpack.c.bf16 %v203, %v201
    %v225 = vpack.c.bf16 %v208, %v206
    %v226 = vpack.c.bf16 %v213, %v211
    %v227 = vpack.c.bf16 %v218, %v216
    %228 = vmatpush.bf16.msra.mxu0 %v227
    %229 = vmatpush.bf16.msra.mxu0 %v226
    %230 = vmatpush.bf16.msra.mxu0 %v225
    %231 = vmatpush.bf16.msra.mxu0 %v224
    %232 = vmatpush.bf16.msra.mxu0 %v223
    %233 = vmatpush.bf16.msra.mxu0 %v222
    %234 = vmatpush.bf16.msra.mxu0 %v221
    %235 = vmatpush.bf16.msra.mxu0 %v220
    %236 = vmatmul.bf16.gmra.mxu0 %v115
    %v237 = vpop.f32.mrf.mxu0
    %v238 = vadd.f32 0.0, %v237
    %v239 = vpop.f32.mrf.mxu0
    %v240 = vadd.f32 0.0, %v239
    %241 = vmatmul.bf16.gmra.mxu0 %v116
    %v242 = vpop.f32.mrf.mxu0
    %v243 = vadd.f32 0.0, %v242
    %v244 = vpop.f32.mrf.mxu0
    %v245 = vadd.f32 0.0, %v244
    %246 = vmatmul.bf16.gmra.mxu0 %v117
    %v247 = vpop.f32.mrf.mxu0
    %v248 = vadd.f32 0.0, %v247
    %v249 = vpop.f32.mrf.mxu0
    %v250 = vadd.f32 0.0, %v249
    %251 = vmatmul.bf16.gmra.mxu0 %v118
    %v252 = vpop.f32.mrf.mxu0
    %v253 = vadd.f32 0.0, %v252
    %v254 = vpop.f32.mrf.mxu0
    %v255 = vadd.f32 0.0, %v254
    %256 = vmatmul.bf16.gmra.mxu0 %v119
    %v257 = vpop.f32.mrf.mxu0
    %v258 = vadd.f32 0.0, %v257
    %v259 = vpop.f32.mrf.mxu0
    %v260 = vadd.f32 0.0, %v259
    %261 = vmatmul.bf16.gmra.mxu0 %v120
    %v262 = vpop.f32.mrf.mxu0
    %v263 = vadd.f32 0.0, %v262
    %v264 = vpop.f32.mrf.mxu0
    %v265 = vadd.f32 0.0, %v264
    %266 = vmatmul.bf16.gmra.mxu0 %v121
    %v267 = vpop.f32.mrf.mxu0
    %v268 = vadd.f32 0.0, %v267
    %v269 = vpop.f32.mrf.mxu0
    %v270 = vadd.f32 0.0, %v269
    %271 = vmatmul.bf16.gmra.mxu0 %v122
    %v272 = vpop.f32.mrf.mxu0
    %v273 = vadd.f32 0.0, %v272
    %v274 = vpop.f32.mrf.mxu0
    %v275 = vadd.f32 0.0, %v274
    %276 = vdwg.mxu0
    %v277 = vmax.f32 %v238, 0.0
    %v278 = vmax.f32 %v240, 0.0
    %v279 = vmax.f32 %v243, 0.0
    %v280 = vmax.f32 %v245, 0.0
    %v281 = vmax.f32 %v248, 0.0
    %v282 = vmax.f32 %v250, 0.0
    %v283 = vmax.f32 %v253, 0.0
    %v284 = vmax.f32 %v255, 0.0
    %v285 = vmax.f32 %v258, 0.0
    %v286 = vmax.f32 %v260, 0.0
    %v287 = vmax.f32 %v263, 0.0
    %v288 = vmax.f32 %v265, 0.0
    %v289 = vmax.f32 %v268, 0.0
    %v290 = vmax.f32 %v270, 0.0
    %v291 = vmax.f32 %v273, 0.0
    %v292 = vmax.f32 %v275, 0.0
    %v293 = vpack.c.bf16 %v278, %v277
    %v294 = vpack.c.bf16 %v280, %v279
    %v295 = vpack.c.bf16 %v282, %v281
    %v296 = vpack.c.bf16 %v284, %v283
    %v297 = vpack.c.bf16 %v286, %v285
    %v298 = vpack.c.bf16 %v288, %v287
    %v299 = vpack.c.bf16 %v290, %v289
    %v300 = vpack.c.bf16 %v292, %v291
    %v301 = vld [vmem:[#allocation8] sm:$0xff]
    %v302 = vld [vmem:[#allocation8 + $0x8] sm:$0xff]
    %v303 = vld [vmem:[#allocation8 + $0x10] sm:$0xff]
    %v304 = vld [vmem:[#allocation8 + $0x18] sm:$0xff]
    %v305 = vld [vmem:[#allocation8 + $0x20] sm:$0xff]
    %v306 = vld [vmem:[#allocation8 + $0x28] sm:$0xff]
    %v307 = vld [vmem:[#allocation8 + $0x30] sm:$0xff]
    %v308 = vld [vmem:[#allocation8 + $0x38] sm:$0xff]
    %v309 = vld [vmem:[#allocation8 + $0x40] sm:$0xff]
    %v310 = vld [vmem:[#allocation8 + $0x48] sm:$0xff]
    %v311 = vld [vmem:[#allocation8 + $0x50] sm:$0xff]
    %v312 = vld [vmem:[#allocation8 + $0x58] sm:$0xff]
    %v313 = vld [vmem:[#allocation8 + $0x60] sm:$0xff]
    %v314 = vld [vmem:[#allocation8 + $0x68] sm:$0xff]
    %v315 = vld [vmem:[#allocation8 + $0x70] sm:$0xff]
    %v316 = vld [vmem:[#allocation8 + $0x78] sm:$0xff]
    %v317 = vld [vmem:[#allocation8 + $0x80] sm:$0xff]
    %v318 = vld [vmem:[#allocation8 + $0x88] sm:$0xff]
    %v319 = vld [vmem:[#allocation8 + $0x90] sm:$0xff]
    %v320 = vld [vmem:[#allocation8 + $0x98] sm:$0xff]
    %v321 = vld [vmem:[#allocation8 + $0xa0] sm:$0xff]
    %v322 = vld [vmem:[#allocation8 + $0xa8] sm:$0xff]
    %v323 = vld [vmem:[#allocation8 + $0xb0] sm:$0xff]
    %v324 = vld [vmem:[#allocation8 + $0xb8] sm:$0xff]
    %v325 = vld [vmem:[#allocation8 + $0xc0] sm:$0xff]
    %v326 = vld [vmem:[#allocation8 + $0xc8] sm:$0xff]
    %v327 = vld [vmem:[#allocation8 + $0xd0] sm:$0xff]
    %v328 = vld [vmem:[#allocation8 + $0xd8] sm:$0xff]
    %v329 = vld [vmem:[#allocation8 + $0xe0] sm:$0xff]
    %v330 = vld [vmem:[#allocation8 + $0xe8] sm:$0xff]
    %v331 = vld [vmem:[#allocation8 + $0xf0] sm:$0xff]
    %v332 = vld [vmem:[#allocation8 + $0xf8] sm:$0xff]
    %v333 = vpack.c.bf16 %v303, %v301
    %v334 = vpack.c.bf16 %v304, %v302
    %v335 = vpack.c.bf16 %v307, %v305
    %v336 = vpack.c.bf16 %v308, %v306
    %v337 = vpack.c.bf16 %v311, %v309
    %v338 = vpack.c.bf16 %v312, %v310
    %v339 = vpack.c.bf16 %v315, %v313
    %v340 = vpack.c.bf16 %v316, %v314
    %v341 = vpack.c.bf16 %v319, %v317
    %v342 = vpack.c.bf16 %v320, %v318
    %v343 = vpack.c.bf16 %v323, %v321
    %v344 = vpack.c.bf16 %v324, %v322
    %v345 = vpack.c.bf16 %v327, %v325
    %v346 = vpack.c.bf16 %v328, %v326
    %v347 = vpack.c.bf16 %v331, %v329
    %v348 = vpack.c.bf16 %v332, %v330
    %349 = vmatpush.bf16.msra.mxu0 %v347
    %350 = vmatpush.bf16.msra.mxu0 %v345
    %351 = vmatpush.bf16.msra.mxu0 %v343
    %352 = vmatpush.bf16.msra.mxu0 %v341
    %353 = vmatpush.bf16.msra.mxu0 %v339
    %354 = vmatpush.bf16.msra.mxu0 %v337
    %355 = vmatpush.bf16.msra.mxu0 %v335
    %356 = vmatpush.bf16.msra.mxu0 %v333
    %357 = vmatmul.bf16.gmra.mxu0 %v293
    %v358 = vpop.f32.mrf.mxu0
    %v359 = vadd.f32 0.0, %v358
    %v360 = vpop.f32.mrf.mxu0
    %v361 = vadd.f32 0.0, %v360
    %362 = vmatmul.bf16.gmra.mxu0 %v294
    %v363 = vpop.f32.mrf.mxu0
    %v364 = vadd.f32 0.0, %v363
    %v365 = vpop.f32.mrf.mxu0
    %v366 = vadd.f32 0.0, %v365
    %367 = vmatmul.bf16.gmra.mxu0 %v295
    %v368 = vpop.f32.mrf.mxu0
    %v369 = vadd.f32 0.0, %v368
    %v370 = vpop.f32.mrf.mxu0
    %v371 = vadd.f32 0.0, %v370
    %372 = vmatmul.bf16.gmra.mxu0 %v296
    %v373 = vpop.f32.mrf.mxu0
    %v374 = vadd.f32 0.0, %v373
    %v375 = vpop.f32.mrf.mxu0
    %v376 = vadd.f32 0.0, %v375
    %377 = vmatmul.bf16.gmra.mxu0 %v297
    %v378 = vpop.f32.mrf.mxu0
    %v379 = vadd.f32 0.0, %v378
    %v380 = vpop.f32.mrf.mxu0
    %v381 = vadd.f32 0.0, %v380
    %382 = vmatmul.bf16.gmra.mxu0 %v298
    %v383 = vpop.f32.mrf.mxu0
    %v384 = vadd.f32 0.0, %v383
    %v385 = vpop.f32.mrf.mxu0
    %v386 = vadd.f32 0.0, %v385
    %387 = vmatmul.bf16.gmra.mxu0 %v299
    %v388 = vpop.f32.mrf.mxu0
    %v389 = vadd.f32 0.0, %v388
    %v390 = vpop.f32.mrf.mxu0
    %v391 = vadd.f32 0.0, %v390
    %392 = vmatmul.bf16.gmra.mxu0 %v300
    %v393 = vpop.f32.mrf.mxu0
    %v394 = vadd.f32 0.0, %v393
    %v395 = vpop.f32.mrf.mxu0
    %v396 = vadd.f32 0.0, %v395
    %397 = vdwg.mxu0
    %398 = vmatpush.bf16.msra.mxu0 %v348
    %399 = vmatpush.bf16.msra.mxu0 %v346
    %400 = vmatpush.bf16.msra.mxu0 %v344
    %401 = vmatpush.bf16.msra.mxu0 %v342
    %402 = vmatpush.bf16.msra.mxu0 %v340
    %403 = vmatpush.bf16.msra.mxu0 %v338
    %404 = vmatpush.bf16.msra.mxu0 %v336
    %405 = vmatpush.bf16.msra.mxu0 %v334
    %406 = vmatmul.bf16.gmra.mxu0 %v293
    %v407 = vpop.f32.mrf.mxu0
    %v408 = vadd.f32 0.0, %v407
    %v409 = vpop.f32.mrf.mxu0
    %v410 = vadd.f32 0.0, %v409
    %411 = vmatmul.bf16.gmra.mxu0 %v294
    %v412 = vpop.f32.mrf.mxu0
    %v413 = vadd.f32 0.0, %v412
    %v414 = vpop.f32.mrf.mxu0
    %v415 = vadd.f32 0.0, %v414
    %416 = vmatmul.bf16.gmra.mxu0 %v295
    %v417 = vpop.f32.mrf.mxu0
    %v418 = vadd.f32 0.0, %v417
    %v419 = vpop.f32.mrf.mxu0
    %v420 = vadd.f32 0.0, %v419
    %421 = vmatmul.bf16.gmra.mxu0 %v296
    %v422 = vpop.f32.mrf.mxu0
    %v423 = vadd.f32 0.0, %v422
    %v424 = vpop.f32.mrf.mxu0
    %v425 = vadd.f32 0.0, %v424
    %426 = vmatmul.bf16.gmra.mxu0 %v297
    %v427 = vpop.f32.mrf.mxu0
    %v428 = vadd.f32 0.0, %v427
    %v429 = vpop.f32.mrf.mxu0
    %v430 = vadd.f32 0.0, %v429
    %431 = vmatmul.bf16.gmra.mxu0 %v298
    %v432 = vpop.f32.mrf.mxu0
    %v433 = vadd.f32 0.0, %v432
    %v434 = vpop.f32.mrf.mxu0
    %v435 = vadd.f32 0.0, %v434
    %436 = vmatmul.bf16.gmra.mxu0 %v299
    %v437 = vpop.f32.mrf.mxu0
    %v438 = vadd.f32 0.0, %v437
    %v439 = vpop.f32.mrf.mxu0
    %v440 = vadd.f32 0.0, %v439
    %441 = vmatmul.bf16.gmra.mxu0 %v300
    %v442 = vpop.f32.mrf.mxu0
    %v443 = vadd.f32 0.0, %v442
    %v444 = vpop.f32.mrf.mxu0
    %v445 = vadd.f32 0.0, %v444
    %446 = vdwg.mxu0
    %v447 = vpack.c.bf16 %v361, %v359
    %v448 = vpack.c.bf16 %v410, %v408
    %v449 = vpack.c.bf16 %v366, %v364
    %v450 = vpack.c.bf16 %v415, %v413
    %v451 = vpack.c.bf16 %v371, %v369
    %v452 = vpack.c.bf16 %v420, %v418
    %v453 = vpack.c.bf16 %v376, %v374
    %v454 = vpack.c.bf16 %v425, %v423
    %v455 = vpack.c.bf16 %v381, %v379
    %v456 = vpack.c.bf16 %v430, %v428
    %v457 = vpack.c.bf16 %v386, %v384
    %v458 = vpack.c.bf16 %v435, %v433
    %v459 = vpack.c.bf16 %v391, %v389
    %v460 = vpack.c.bf16 %v440, %v438
    %v461 = vpack.c.bf16 %v396, %v394
    %v462 = vpack.c.bf16 %v445, %v443
    %463 = vmatpush.bf16.msra.mxu0 %v461
    %464 = vmatpush.bf16.msra.mxu0 %v459
    %465 = vmatpush.bf16.msra.mxu0 %v457
    %466 = vmatpush.bf16.msra.mxu0 %v455
    %467 = vmatpush.bf16.msra.mxu0 %v453
    %468 = vmatpush.bf16.msra.mxu0 %v451
    %469 = vmatpush.bf16.msra.mxu0 %v449
    %470 = vmatpush.bf16.msra.mxu0 %v447
    %471 = vmatmul.bf16.gmra.mxu0 %v115
    %v472 = vpop.f32.mrf.mxu0
    %v473 = vadd.f32 0.0, %v472
    %v474 = vpop.f32.mrf.mxu0
    %v475 = vadd.f32 0.0, %v474
    %476 = vmatmul.bf16.gmra.mxu0 %v116
    %v477 = vpop.f32.mrf.mxu0
    %v478 = vadd.f32 0.0, %v477
    %v479 = vpop.f32.mrf.mxu0
    %v480 = vadd.f32 0.0, %v479
    %481 = vmatmul.bf16.gmra.mxu0 %v117
    %v482 = vpop.f32.mrf.mxu0
    %v483 = vadd.f32 0.0, %v482
    %v484 = vpop.f32.mrf.mxu0
    %v485 = vadd.f32 0.0, %v484
    %486 = vmatmul.bf16.gmra.mxu0 %v118
    %v487 = vpop.f32.mrf.mxu0
    %v488 = vadd.f32 0.0, %v487
    %v489 = vpop.f32.mrf.mxu0
    %v490 = vadd.f32 0.0, %v489
    %491 = vmatmul.bf16.gmra.mxu0 %v119
    %v492 = vpop.f32.mrf.mxu0
    %v493 = vadd.f32 0.0, %v492
    %v494 = vpop.f32.mrf.mxu0
    %v495 = vadd.f32 0.0, %v494
    %496 = vmatmul.bf16.gmra.mxu0 %v120
    %v497 = vpop.f32.mrf.mxu0
    %v498 = vadd.f32 0.0, %v497
    %v499 = vpop.f32.mrf.mxu0
    %v500 = vadd.f32 0.0, %v499
    %501 = vmatmul.bf16.gmra.mxu0 %v121
    %v502 = vpop.f32.mrf.mxu0
    %v503 = vadd.f32 0.0, %v502
    %v504 = vpop.f32.mrf.mxu0
    %v505 = vadd.f32 0.0, %v504
    %506 = vmatmul.bf16.gmra.mxu0 %v122
    %v507 = vpop.f32.mrf.mxu0
    %v508 = vadd.f32 0.0, %v507
    %v509 = vpop.f32.mrf.mxu0
    %v510 = vadd.f32 0.0, %v509
    %511 = vdwg.mxu0
    %512 = vmatpush.bf16.msra.mxu0 %v462
    %513 = vmatpush.bf16.msra.mxu0 %v460
    %514 = vmatpush.bf16.msra.mxu0 %v458
    %515 = vmatpush.bf16.msra.mxu0 %v456
    %516 = vmatpush.bf16.msra.mxu0 %v454
    %517 = vmatpush.bf16.msra.mxu0 %v452
    %518 = vmatpush.bf16.msra.mxu0 %v450
    %519 = vmatpush.bf16.msra.mxu0 %v448
    %520 = vmatmul.bf16.gmra.mxu0 %v115
    %v521 = vpop.f32.mrf.mxu0
    %v522 = vadd.f32 0.0, %v521
    %v523 = vpop.f32.mrf.mxu0
    %v524 = vadd.f32 0.0, %v523
    %525 = vmatmul.bf16.gmra.mxu0 %v116
    %v526 = vpop.f32.mrf.mxu0
    %v527 = vadd.f32 0.0, %v526
    %v528 = vpop.f32.mrf.mxu0
    %v529 = vadd.f32 0.0, %v528
    %530 = vmatmul.bf16.gmra.mxu0 %v117
    %v531 = vpop.f32.mrf.mxu0
    %v532 = vadd.f32 0.0, %v531
    %v533 = vpop.f32.mrf.mxu0
    %v534 = vadd.f32 0.0, %v533
    %535 = vmatmul.bf16.gmra.mxu0 %v118
    %v536 = vpop.f32.mrf.mxu0
    %v537 = vadd.f32 0.0, %v536
    %v538 = vpop.f32.mrf.mxu0
    %v539 = vadd.f32 0.0, %v538
    %540 = vmatmul.bf16.gmra.mxu0 %v119
    %v541 = vpop.f32.mrf.mxu0
    %v542 = vadd.f32 0.0, %v541
    %v543 = vpop.f32.mrf.mxu0
    %v544 = vadd.f32 0.0, %v543
    %545 = vmatmul.bf16.gmra.mxu0 %v120
    %v546 = vpop.f32.mrf.mxu0
    %v547 = vadd.f32 0.0, %v546
    %v548 = vpop.f32.mrf.mxu0
    %v549 = vadd.f32 0.0, %v548
    %550 = vmatmul.bf16.gmra.mxu0 %v121
    %v551 = vpop.f32.mrf.mxu0
    %v552 = vadd.f32 0.0, %v551
    %v553 = vpop.f32.mrf.mxu0
    %v554 = vadd.f32 0.0, %v553
    %555 = vmatmul.bf16.gmra.mxu0 %v122
    %v556 = vpop.f32.mrf.mxu0
    %v557 = vadd.f32 0.0, %v556
    %v558 = vpop.f32.mrf.mxu0
    %v559 = vadd.f32 0.0, %v558
    %560 = vdwg.mxu0
    %v561 = vld [vmem:[#allocation10] sm:$0xff]
    %v562 = vld [vmem:[#allocation10 + $0x8] sm:$0xff]
    %v563 = vld [vmem:[#allocation10 + $0x10] sm:$0xff]
    %v564 = vld [vmem:[#allocation10 + $0x18] sm:$0xff]
    %v565 = vld [vmem:[#allocation10 + $0x20] sm:$0xff]
    %v566 = vld [vmem:[#allocation10 + $0x28] sm:$0xff]
    %v567 = vld [vmem:[#allocation10 + $0x30] sm:$0xff]
    %v568 = vld [vmem:[#allocation10 + $0x38] sm:$0xff]
    %v569 = vld [vmem:[#allocation10 + $0x40] sm:$0xff]
    %v570 = vld [vmem:[#allocation10 + $0x48] sm:$0xff]
    %v571 = vld [vmem:[#allocation10 + $0x50] sm:$0xff]
    %v572 = vld [vmem:[#allocation10 + $0x58] sm:$0xff]
    %v573 = vld [vmem:[#allocation10 + $0x60] sm:$0xff]
    %v574 = vld [vmem:[#allocation10 + $0x68] sm:$0xff]
    %v575 = vld [vmem:[#allocation10 + $0x70] sm:$0xff]
    %v576 = vld [vmem:[#allocation10 + $0x78] sm:$0xff]
    %v577 = vmul.f32 %v522, 1.442695
    %v578 = vpow.pop %v577
    %v579 = vmul.f32 %v524, 1.442695
    %v580 = vpow.pop %v579
    %v581 = vmul.f32 %v527, 1.442695
    %v582 = vpow.pop %v581
    %v583 = vmul.f32 %v529, 1.442695
    %v584 = vpow.pop %v583
    %v585 = vmul.f32 %v532, 1.442695
    %v586 = vpow.pop %v585
    %v587 = vmul.f32 %v534, 1.442695
    %v588 = vpow.pop %v587
    %v589 = vmul.f32 %v537, 1.442695
    %v590 = vpow.pop %v589
    %v591 = vmul.f32 %v539, 1.442695
    %v592 = vpow.pop %v591
    %v593 = vmul.f32 %v542, 1.442695
    %v594 = vpow.pop %v593
    %v595 = vmul.f32 %v544, 1.442695
    %v596 = vpow.pop %v595
    %v597 = vmul.f32 %v547, 1.442695
    %v598 = vpow.pop %v597
    %v599 = vmul.f32 %v549, 1.442695
    %v600 = vpow.pop %v599
    %v601 = vmul.f32 %v552, 1.442695
    %v602 = vpow.pop %v601
    %v603 = vmul.f32 %v554, 1.442695
    %v604 = vpow.pop %v603
    %v605 = vmul.f32 %v557, 1.442695
    %v606 = vpow.pop %v605
    %v607 = vmul.f32 %v559, 1.442695
    %v608 = vpow.pop %v607
    %v609 = vmul.f32 %v561, %v578
    %v610 = vmul.f32 %v562, %v580
    %v611 = vmul.f32 %v563, %v582
    %v612 = vmul.f32 %v564, %v584
    %v613 = vmul.f32 %v565, %v586
    %v614 = vmul.f32 %v566, %v588
    %v615 = vmul.f32 %v567, %v590
    %v616 = vmul.f32 %v568, %v592
    %v617 = vmul.f32 %v569, %v594
    %v618 = vmul.f32 %v570, %v596
    %v619 = vmul.f32 %v571, %v598
    %v620 = vmul.f32 %v572, %v600
    %v621 = vmul.f32 %v573, %v602
    %v622 = vmul.f32 %v574, %v604
    %v623 = vmul.f32 %v575, %v606
    %v624 = vmul.f32 %v576, %v608
    %v625 = vadd.f32 %v609, %v473
    %v626 = vadd.f32 %v610, %v475
    %v627 = vadd.f32 %v611, %v478
    %v628 = vadd.f32 %v612, %v480
    %v629 = vadd.f32 %v613, %v483
    %v630 = vadd.f32 %v614, %v485
    %v631 = vadd.f32 %v615, %v488
    %v632 = vadd.f32 %v616, %v490
    %v633 = vadd.f32 %v617, %v493
    %v634 = vadd.f32 %v618, %v495
    %v635 = vadd.f32 %v619, %v498
    %v636 = vadd.f32 %v620, %v500
    %v637 = vadd.f32 %v621, %v503
    %v638 = vadd.f32 %v622, %v505
    %v639 = vadd.f32 %v623, %v508
    %v640 = vadd.f32 %v624, %v510
    %641 = vst [vmem:[#allocation11] sm:$0xff] %v625
    %642 = vst [vmem:[#allocation11 + $0x8] sm:$0xff] %v626
    %643 = vst [vmem:[#allocation11 + $0x10] sm:$0xff] %v627
    %644 = vst [vmem:[#allocation11 + $0x18] sm:$0xff] %v628
    %645 = vst [vmem:[#allocation11 + $0x20] sm:$0xff] %v629
    %646 = vst [vmem:[#allocation11 + $0x28] sm:$0xff] %v630
    %647 = vst [vmem:[#allocation11 + $0x30] sm:$0xff] %v631
    %648 = vst [vmem:[#allocation11 + $0x38] sm:$0xff] %v632
    %649 = vst [vmem:[#allocation11 + $0x40] sm:$0xff] %v633
    %650 = vst [vmem:[#allocation11 + $0x48] sm:$0xff] %v634
    %651 = vst [vmem:[#allocation11 + $0x50] sm:$0xff] %v635
    %652 = vst [vmem:[#allocation11 + $0x58] sm:$0xff] %v636
    %653 = vst [vmem:[#allocation11 + $0x60] sm:$0xff] %v637
    %654 = vst [vmem:[#allocation11 + $0x68] sm:$0xff] %v638
    %655 = vst [vmem:[#allocation11 + $0x70] sm:$0xff] %v639
    %656 = vst [vmem:[#allocation11 + $0x78] sm:$0xff] %v640
    // Predicated region
    $region42: #{tpu_custom_call.1} parent=1 // pred_check
      _
    $region43: #{tpu_custom_call.1} parent=1 // pred_check_branch
      %658 = sbr.rel (0) target = $region45
    $region44: #{tpu_custom_call.1} parent=1 // pred_region
      %660 = vsyncadd [#allocation4], 0
      %s661 = sshll.u32 [#allocation11], 4
      %s662 = int_to_ptr.vmem [resolvable:$true] %s661
      %s663 = sshll.u32 %s5, 4
      %s664 = int_to_ptr.hbm [resolvable:$true] %s663
      %669 = dma.vmem_to_hbm [thread:$0]  %s662, 2048, %s664, [#allocation4], 128, 128, 8
    $region45: #{tpu_custom_call.1} parent=1 // pred_fallthru
      _
    // Predicated region
    $region46: #{tpu_custom_call.1} parent=1 // pred_check
      _
    $region47: #{tpu_custom_call.1} parent=1 // pred_check_branch
      %671 = sbr.rel (0) target = $region49
    $region48: #{tpu_custom_call.1} parent=1 // pred_region
      %673 = dma.done [#allocation4], 2048
    $region49: #{tpu_custom_call.1} parent=1 // pred_fallthru
      _
    %674 = vsyncpa [#allocation3], 1
    %675 = vsyncpa [#allocation6], 1
    %676 = vsyncpa [#allocation9], 1
    %677 = vsyncpa [#allocation4], 1

</llo_original>
